<compile_context>
chip_gen: v6e
topology: v6e:2x2x1
jax: 0.10.0
libtpu: 0.0.40
codegen_flags: <defaults>
</compile_context>

<pallas_src>
import jax
import jax.numpy as jnp
from jax.experimental import pallas as pl
from jax.experimental.pallas import tpu as pltpu

LN_EPS = 1e-5                       # torch.nn.LayerNorm default
TILE_BUDGET_BYTES = 8 << 20         # ~8 MiB per streamed tile
VMEM_LIMIT_BYTES = 48 << 20         # explicit scoped-VMEM limit (safe on v5e/v6e/v7x)


def _ada_layer_norm_kernel(scale_ref, shift_ref, x_ref, o_ref):
    # scale_ref : (TB, 1, D)   precomputed per-batch scale rows
    # shift_ref : (TB, 1, D)   precomputed per-batch shift rows
    # x_ref     : (TB, TS, D)  input tile
    # o_ref     : (TB, TS, D)  output tile
    x = x_ref[...].astype(jnp.float32)

    # Two-pass LayerNorm (no affine), reusing the centered vregs.
    mean = jnp.mean(x, axis=-1, keepdims=True)                  # (TB, TS, 1)
    centered = x - mean
    var = jnp.mean(centered * centered, axis=-1, keepdims=True)
    xn = centered * jax.lax.rsqrt(var + LN_EPS)

    scale = scale_ref[...].astype(jnp.float32)                  # (TB, 1, D)
    shift = shift_ref[...].astype(jnp.float32)                  # (TB, 1, D)
    o_ref[...] = (xn * (1.0 + scale) + shift).astype(o_ref.dtype)


def _pick_tiles(B, S, D, itemsize, budget_bytes=TILE_BUDGET_BYTES):
    """Pick (TB, TS): batch-block and sequence-tile sizes.

    If the whole sequence fits in the budget, pack several batch rows per
    tile (restores multi-MiB DMAs for short sequences).  Otherwise use one
    batch row per tile and the largest multiple-of-8 sequence tile that fits;
    the grid uses cdiv so any S is handled (edge blocks are clamped)."""
    row_bytes = max(1, D * itemsize)
    max_rows = max(8, budget_bytes // row_bytes)
    if S <= max_rows:
        ts = S
        tb = max(1, min(B, max_rows // max(1, S)))
        return tb, ts
    ts = max(8, (max_rows // 8) * 8)
    return 1, min(ts, S)


def ada_layer_norm(x, timestep, emb_table, w, b):
    """x: (B, S, D); timestep: (B, 1) int32.

    emb_table: (num_embeddings, D)  -- nn.Embedding weight
    w        : (D, 2D)              -- nn.Linear weight, pre-transposed (W_pt.T)
    b        : (1, 2D)              -- nn.Linear bias
    """
    B, S, D = x.shape

    # --- Hoisted conditioning path (runs once per batch in XLA) -------------
    emb = jnp.take(emb_table, timestep.reshape(-1), axis=0).astype(jnp.float32)  # (B, D)
    emb = emb * jax.nn.sigmoid(emb)                                              # SiLU
    proj = emb @ w.astype(jnp.float32) + b.reshape(-1).astype(jnp.float32)       # (B, 2D)
    scale = proj[:, :D].reshape(B, 1, D)
    shift = proj[:, D:].reshape(B, 1, D)

    # --- Pallas kernel: HBM-bound LayerNorm + modulation ---------------------
    tb, ts = _pick_tiles(B, S, D, jnp.dtype(x.dtype).itemsize)
    n_b = pl.cdiv(B, tb)
    n_s = pl.cdiv(S, ts)

    # Put the larger independent axis first so v7x megacore sharding splits
    # the memory-bound grid across both TensorCores even when the other axis
    # has extent 1.  (Neutral on single-TC v5e/v6e.)
    if n_s >= n_b:
        grid = (n_s, n_b)
        x_map = lambda si, bi: (bi, si, 0)
        c_map = lambda si, bi: (bi, 0, 0)
    else:
        grid = (n_b, n_s)
        x_map = lambda bi, si: (bi, si, 0)
        c_map = lambda bi, si: (bi, 0, 0)

    grid_spec = pltpu.PrefetchScalarGridSpec(
        num_scalar_prefetch=0,
        grid=grid,
        in_specs=[
            pl.BlockSpec((tb, 1, D), c_map),    # scale
            pl.BlockSpec((tb, 1, D), c_map),    # shift
            pl.BlockSpec((tb, ts, D), x_map),   # x
        ],
        out_specs=pl.BlockSpec((tb, ts, D), x_map),
    )

    return pl.pallas_call(
        _ada_layer_norm_kernel,
        out_shape=jax.ShapeDtypeStruct((B, S, D), x.dtype),
        grid_spec=grid_spec,
        compiler_params=pltpu.CompilerParams(
            dimension_semantics=("parallel", "parallel"),
            vmem_limit_bytes=VMEM_LIMIT_BYTES,
        ),
    )(scale, shift, x)


def ada_layer_norm_ref(x, timestep, emb_table, w, b):
    """Pure-JAX reference matching the PyTorch forward."""
    emb = emb_table[timestep.reshape(-1)].reshape(timestep.shape + (emb_table.shape[-1],))
    emb = jax.nn.silu(emb)
    proj = emb @ w + b.reshape(-1)
    d = x.shape[-1]
    scale, shift = proj[..., :d], proj[..., d:]
    mean = jnp.mean(x, axis=-1, keepdims=True)
    var = jnp.mean((x - mean) ** 2, axis=-1, keepdims=True)
    xn = (x - mean) / jnp.sqrt(var + LN_EPS)
    return xn * (1.0 + scale) + shift


if __name__ == "__main__":
    # Small but lane-aligned demo shapes: D = 128 keeps the output lane-dense.
    B, S, D = 2, 8, 128
    num_embeddings = 10

    key = jax.random.PRNGKey(0)
    k_x, k_emb, k_w, k_b, k_t = jax.random.split(key, 5)

    x = jax.random.normal(k_x, (B, S, D), dtype=jnp.float32)
    timestep = jax.random.randint(k_t, (B, 1), 0, num_embeddings, dtype=jnp.int32)

    # Deterministic synthetic parameters (shapes from the module __init__).
    emb_table = jax.random.normal(k_emb, (num_embeddings, D), dtype=jnp.float32)
    w = jax.random.normal(k_w, (D, 2 * D), dtype=jnp.float32) * 0.05   # Linear weight (transposed)
    b = jax.random.normal(k_b, (1, 2 * D), dtype=jnp.float32) * 0.05   # Linear bias

    out = ada_layer_norm(x, timestep, emb_table, w, b)
    jax.block_until_ready(out)

    ref = ada_layer_norm_ref(x, timestep, emb_table, w, b)
    assert out.shape == (B, S, D)
    assert jnp.allclose(out, ref, atol=1e-4, rtol=1e-4), "mismatch vs reference"

    print("KERNEL_OK")
</pallas_src>

<mosaic_0001>
module attributes {stable_mosaic.version = 11 : i64} {
  func.func @_ada_layer_norm_kernel(%arg0: i32, %arg1: i32, %arg2: memref<2x1x128xf32, #tpu.memory_space<vmem>>, %arg3: memref<2x1x128xf32, #tpu.memory_space<vmem>>, %arg4: memref<2x8x128xf32, #tpu.memory_space<vmem>>, %arg5: memref<2x8x128xf32, #tpu.memory_space<vmem>>) attributes {dimension_semantics = [#tpu.dimension_semantics<parallel>, #tpu.dimension_semantics<parallel>], iteration_bounds = array<i64: 1, 1>, scalar_prefetch = 0 : i64, scratch_operands = 0 : i64, tpu.core_type = #tpu.core_type<tc>, window_params = [{transform_indices = @transform_0, window_bounds = array<i64: 2, 1, 128>}, {transform_indices = @transform_1, window_bounds = array<i64: 2, 1, 128>}, {transform_indices = @transform_2, window_bounds = array<i64: 2, 8, 128>}, {transform_indices = @transform_3, window_bounds = array<i64: 2, 8, 128>}]} {
    %c0 = arith.constant 0 : index
    %c0_0 = arith.constant 0 : index
    %c0_1 = arith.constant 0 : index
    %0 = vector.load %arg4[%c0, %c0_0, %c0_1] : memref<2x8x128xf32, #tpu.memory_space<vmem>>, vector<2x8x128xf32>
    %cst = arith.constant dense<0.000000e+00> : vector<2x8xf32>
    %1 = vector.multi_reduction <add>, %0, %cst [2] : vector<2x8x128xf32> to vector<2x8xf32>
    %2 = vector.shape_cast %1 : vector<2x8xf32> to vector<2x8x1xf32>
    %cst_2 = arith.constant 1.280000e+02 : f32
    %3 = vector.broadcast %cst_2 : f32 to vector<2x8x1xf32>
    %4 = arith.divf %2, %3 : vector<2x8x1xf32>
    %5 = vector.broadcast %4 : vector<2x8x1xf32> to vector<2x8x128xf32>
    %6 = arith.subf %0, %5 : vector<2x8x128xf32>
    %7 = arith.mulf %6, %6 : vector<2x8x128xf32>
    %cst_3 = arith.constant dense<0.000000e+00> : vector<2x8xf32>
    %8 = vector.multi_reduction <add>, %7, %cst_3 [2] : vector<2x8x128xf32> to vector<2x8xf32>
    %9 = vector.shape_cast %8 : vector<2x8xf32> to vector<2x8x1xf32>
    %cst_4 = arith.constant 1.280000e+02 : f32
    %10 = vector.broadcast %cst_4 : f32 to vector<2x8x1xf32>
    %11 = arith.divf %9, %10 : vector<2x8x1xf32>
    %cst_5 = arith.constant 9.99999974E-6 : f32
    %12 = vector.broadcast %cst_5 : f32 to vector<2x8x1xf32>
    %13 = arith.addf %11, %12 : vector<2x8x1xf32>
    %14 = math.rsqrt %13 : vector<2x8x1xf32>
    %15 = vector.broadcast %14 : vector<2x8x1xf32> to vector<2x8x128xf32>
    %16 = arith.mulf %6, %15 : vector<2x8x128xf32>
    %c0_6 = arith.constant 0 : index
    %c0_7 = arith.constant 0 : index
    %c0_8 = arith.constant 0 : index
    %17 = vector.load %arg2[%c0_6, %c0_7, %c0_8] : memref<2x1x128xf32, #tpu.memory_space<vmem>>, vector<2x1x128xf32>
    %c0_9 = arith.constant 0 : index
    %c0_10 = arith.constant 0 : index
    %c0_11 = arith.constant 0 : index
    %18 = vector.load %arg3[%c0_9, %c0_10, %c0_11] : memref<2x1x128xf32, #tpu.memory_space<vmem>>, vector<2x1x128xf32>
    %cst_12 = arith.constant 1.000000e+00 : f32
    %19 = vector.broadcast %cst_12 : f32 to vector<2x1x128xf32>
    %20 = arith.addf %19, %17 : vector<2x1x128xf32>
    %21 = vector.broadcast %20 : vector<2x1x128xf32> to vector<2x8x128xf32>
    %22 = arith.mulf %16, %21 : vector<2x8x128xf32>
    %23 = vector.broadcast %18 : vector<2x1x128xf32> to vector<2x8x128xf32>
    %24 = arith.addf %22, %23 : vector<2x8x128xf32>
    %c0_13 = arith.constant 0 : index
    %c0_14 = arith.constant 0 : index
    %c0_15 = arith.constant 0 : index
    %25 = vector.load %arg5[%c0_13, %c0_14, %c0_15] : memref<2x8x128xf32, #tpu.memory_space<vmem>>, vector<2x8x128xf32>
    tpu.vector_store %arg5[%c0_13, %c0_14, %c0_15], %24 {strides = array<i32>} : memref<2x8x128xf32, #tpu.memory_space<vmem>>, vector<2x8x128xf32>,
    return
  }
  func.func @transform_0(%arg0: i32, %arg1: i32) -> (i32, i32, i32) {
    %c0_i32 = arith.constant 0 : i32
    %c0_i32_0 = arith.constant 0 : i32
    %c0_i32_1 = arith.constant 0 : i32
    return %arg1, %c0_i32, %c0_i32_0 : i32, i32, i32
  }
  func.func @transform_1(%arg0: i32, %arg1: i32) -> (i32, i32, i32) {
    %c0_i32 = arith.constant 0 : i32
    %c0_i32_0 = arith.constant 0 : i32
    %c0_i32_1 = arith.constant 0 : i32
    return %arg1, %c0_i32, %c0_i32_0 : i32, i32, i32
  }
  func.func @transform_2(%arg0: i32, %arg1: i32) -> (i32, i32, i32) {
    %c0_i32 = arith.constant 0 : i32
    %c0_i32_0 = arith.constant 0 : i32
    return %arg1, %arg0, %c0_i32 : i32, i32, i32
  }
  func.func @transform_3(%arg0: i32, %arg1: i32) -> (i32, i32, i32) {
    %c0_i32 = arith.constant 0 : i32
    %c0_i32_0 = arith.constant 0 : i32
    return %arg1, %arg0, %c0_i32 : i32, i32, i32
  }
}

</mosaic_0001>

<llo_original>
// kernel: tpu_custom_call.1
$region0: #{tpu_custom_call.1}
  #allocation0 [shape = 'u32[]', space=smem, size = 0x4, offset = 0x4, fixed_abs, tag = 'smem constant byte address 0x4 - core index']
  #allocation1 [shape = 'u32[144,128]{1,0:T(1,128)}', space=vmem, size = 0x12000, scoped, tag = 'internal scratch']
  %s0 = inlined_call_operand.hbm [shape: f32[2,1,128], index: 0, kind: input, shape index: {}]
  %s1 = inlined_call_operand.hbm [shape: f32[2,1,128], index: 1, kind: input, shape index: {}]
  %s2 = inlined_call_operand.hbm [shape: f32[2,8,128], index: 2, kind: input, shape index: {}]
  %s3 = inlined_call_operand.hbm [shape: f32[2,8,128], index: 3, kind: output, shape index: {}]
  %s4 = sld [smem:[#allocation0]]
  $region34: #{tpu_custom_call.1} parent=0
    _
  %s6 = ssub.s32 1, %s4
  %s7 = scalar_select 0, %s6, %s4
  $region1: #{tpu_custom_call.1} parent=0
    #allocation2 [shape = 'u8[1024]{0}', space=vmem, size = 0x400, scoped, tag = 'input window, operand 0, single buffered']
    #allocation3 [shape = 's32[1]{0}', space=sflag, size = 0x4, scoped, tag = 'scoped memory for tpu_custom_call.1']
    #allocation4 [shape = 's32[1]{0}', space=sflag, size = 0x4, scoped, tag = 'scoped memory for tpu_custom_call.1']
    #allocation5 [shape = 'u8[1024]{0}', space=vmem, size = 0x400, scoped, tag = 'input window, operand 1, single buffered']
    #allocation6 [shape = 's32[1]{0}', space=sflag, size = 0x4, scoped, tag = 'scoped memory for tpu_custom_call.1']
    #allocation7 [shape = 'u8[8192]{0}', space=vmem, size = 0x2000, scoped, tag = 'input window, operand 2, single buffered']
    #allocation8 [shape = 'u8[8192]{0}', space=vmem, size = 0x2000, scoped, tag = 'output window, operand 0, single buffered']
    %8 = vsyncpa [#allocation3], 0
    %9 = vsyncpa [#allocation6], 0
    %10 = vsyncpa [#allocation4], 0
    // Predicated region
    $region2: #{tpu_custom_call.1} parent=1 // pred_check
      _
    $region3: #{tpu_custom_call.1} parent=1 // pred_check_branch
      %12 = sbr.rel (0) target = $region5
    $region4: #{tpu_custom_call.1} parent=1 // pred_region
      %s14 = ssub.s32 32, 32
      %15 = vsyncadd [#allocation3], %s14
      %s16 = sshll.u32 [#allocation2], 4
      %s17 = int_to_ptr.vmem [resolvable:$true] %s16
      %22 = dma.hbm_to_vmem [thread:$0]  %s0, 32, %s17, [#allocation3], 16, 16, 1
    $region5: #{tpu_custom_call.1} parent=1 // pred_fallthru
      _
    // Predicated region
    $region6: #{tpu_custom_call.1} parent=1 // pred_check
      _
    $region7: #{tpu_custom_call.1} parent=1 // pred_check_branch
      %24 = sbr.rel (0) target = $region9
    $region8: #{tpu_custom_call.1} parent=1 // pred_region
      %s26 = ssub.s32 32, 32
      %27 = vsyncadd [#allocation6], %s26
      %s28 = sshll.u32 [#allocation5], 4
      %s29 = int_to_ptr.vmem [resolvable:$true] %s28
      %34 = dma.hbm_to_vmem [thread:$0]  %s1, 32, %s29, [#allocation6], 16, 16, 1
    $region9: #{tpu_custom_call.1} parent=1 // pred_fallthru
      _
    // Predicated region
    $region10: #{tpu_custom_call.1} parent=1 // pred_check
      _
    $region11: #{tpu_custom_call.1} parent=1 // pred_check_branch
      %36 = sbr.rel (0) target = $region13
    $region12: #{tpu_custom_call.1} parent=1 // pred_region
      %s38 = ssub.s32 256, 256
      %39 = vsyncadd [#allocation6], %s38
      %s40 = sshll.u32 [#allocation7], 4
      %s41 = int_to_ptr.vmem [resolvable:$true] %s40
      %46 = dma.hbm_to_vmem [thread:$0]  %s2, 256, %s41, [#allocation6], 128, 128, 8
    $region13: #{tpu_custom_call.1} parent=1 // pred_fallthru
      _
    // Predicated region
    $region14: #{tpu_custom_call.1} parent=1 // pred_check
      _
    $region15: #{tpu_custom_call.1} parent=1 // pred_check_branch
      %48 = sbr.rel (0) target = $region17
    $region16: #{tpu_custom_call.1} parent=1 // pred_region
      %49 = dma.done [#allocation3], 32
    $region17: #{tpu_custom_call.1} parent=1 // pred_fallthru
      _
    // Predicated region
    $region18: #{tpu_custom_call.1} parent=1 // pred_check
      _
    $region19: #{tpu_custom_call.1} parent=1 // pred_check_branch
      %51 = sbr.rel (0) target = $region21
    $region20: #{tpu_custom_call.1} parent=1 // pred_region
      %52 = dma.done [#allocation6], 32
    $region21: #{tpu_custom_call.1} parent=1 // pred_fallthru
      _
    // Predicated region
    $region22: #{tpu_custom_call.1} parent=1 // pred_check
      _
    $region23: #{tpu_custom_call.1} parent=1 // pred_check_branch
      %54 = sbr.rel (0) target = $region25
    $region24: #{tpu_custom_call.1} parent=1 // pred_region
      %55 = dma.done [#allocation6], 256
    $region25: #{tpu_custom_call.1} parent=1 // pred_fallthru
      _
    %v56 = vld [vmem:[#allocation7] sm:$0xff]
    %v57 = vld [vmem:[#allocation7 + $0x8] sm:$0xff]
    %58 = vadd.xlane.f32.xlu0 %v56
    %v59 = vpop.xlane.xlu0 %58
    %60 = vadd.xlane.f32.xlu0 %v57
    %v61 = vpop.xlane.xlu0 %60
    %v62 = vrcp.pop 128.0
    %v63 = vmul.f32 %v59, %v62
    %v64 = vmul.f32 %v61, %v62
    %v65 = vsub.f32 %v56, %v63
    %v66 = vsub.f32 %v57, %v64
    %v67 = vmul.f32 %v65, %v65
    %v68 = vmul.f32 %v66, %v66
    %69 = vadd.xlane.f32.xlu0 %v67
    %v70 = vpop.xlane.xlu0 %69
    %71 = vadd.xlane.f32.xlu0 %v68
    %v72 = vpop.xlane.xlu0 %71
    %v73 = vmul.f32 %v70, %v62
    %v74 = vmul.f32 %v72, %v62
    %v75 = vadd.f32 %v73, 1e-05
    %v76 = vadd.f32 %v74, 1e-05
    %v77 = vrsqrt.pop %v75
    %v78 = vrsqrt.pop %v76
    %v79 = vmul.f32 %v65, %v77
    %v80 = vmul.f32 %v66, %v78
    %v81 = vld [vmem:[#allocation2] sm:$0x1]
    %v82 = vld [vmem:[#allocation2 + $0x1] sm:$0x1]
    %v83 = vld [vmem:[#allocation5] sm:$0x1]
    %v84 = vld [vmem:[#allocation5 + $0x1] sm:$0x1]
    %v85 = vadd.f32 %v81, 1.0
    %v86 = vadd.f32 %v82, 1.0
    %v89 = vlaneseq
    %v90 = vshrl.u32 %v89, 7
    %v91 = vsub.s32 0, %v90
    %v92 = vrot.slane %v85, %v91
    %v93 = vlaneseq
    %v94 = vshrl.u32 %v93, 7
    %v95 = vsub.s32 0, %v94
    %v96 = vrot.slane %v86, %v95
    %v99 = vmul.f32 %v79, %v92
    %v100 = vmul.f32 %v80, %v96
    %v103 = vlaneseq
    %v104 = vshrl.u32 %v103, 7
    %v105 = vsub.s32 0, %v104
    %v106 = vrot.slane %v83, %v105
    %v107 = vlaneseq
    %v108 = vshrl.u32 %v107, 7
    %v109 = vsub.s32 0, %v108
    %v110 = vrot.slane %v84, %v109
    %v113 = vadd.f32 %v99, %v106
    %v114 = vadd.f32 %v100, %v110
    %115 = vst [vmem:[#allocation8] sm:$0xff] %v113
    %116 = vst [vmem:[#allocation8 + $0x8] sm:$0xff] %v114
    // Predicated region
    $region26: #{tpu_custom_call.1} parent=1 // pred_check
      _
    $region27: #{tpu_custom_call.1} parent=1 // pred_check_branch
      %118 = sbr.rel (0) target = $region29
    $region28: #{tpu_custom_call.1} parent=1 // pred_region
      %s120 = ssub.s32 256, 256
      %121 = vsyncadd [#allocation4], %s120
      %s122 = sshll.u32 [#allocation8], 4
      %s123 = int_to_ptr.vmem [resolvable:$true] %s122
      %128 = dma.vmem_to_hbm [thread:$0]  %s123, 256, %s3, [#allocation4], 128, 128, 8
    $region29: #{tpu_custom_call.1} parent=1 // pred_fallthru
      _
    // Predicated region
    $region30: #{tpu_custom_call.1} parent=1 // pred_check
      _
    $region31: #{tpu_custom_call.1} parent=1 // pred_check_branch
      %130 = sbr.rel (0) target = $region33
    $region32: #{tpu_custom_call.1} parent=1 // pred_region
      %131 = dma.done [#allocation4], 256
    $region33: #{tpu_custom_call.1} parent=1 // pred_fallthru
      _
    %132 = vsyncpa [#allocation3], 1
    %133 = vsyncpa [#allocation6], 1
    %134 = vsyncpa [#allocation4], 1

</llo_original>
